<compile_context>
chip_gen: v7x
topology: tpu7x:2x2x1
jax: 0.10.0
libtpu: 0.0.40
codegen_flags: <defaults>
</compile_context>

<pallas_src>
import functools

import jax
import jax.numpy as jnp
from jax.experimental import pallas as pl
from jax.experimental.pallas import tpu as pltpu


def _ddpm_fma_kernel(coef_ref, z_ref, eta_ref, out_ref):
    # coef_ref        : VMEM (2, TB) f32  row 0 = sqrt(a_bar[t]), row 1 = sqrt(1 - a_bar[t])
    # z_ref, eta_ref  : VMEM (D, TB) f32  feature-major, batch on the lane axis
    # out_ref         : VMEM (D, TB) f32
    sa = coef_ref[0:1, :]   # (1, TB) -> broadcast over the D sublanes
    sb = coef_ref[1:2, :]
    out_ref[...] = sa * z_ref[...] + sb * eta_ref[...]


def _round_up(x, m):
    return ((x + m - 1) // m) * m


def _pick_lane_tile(batch, max_lane_tile):
    # Small batches: one full-extent block (block dim == array dim is exempt
    # from the 128-multiple rule).
    if batch <= 2048:
        return batch
    # Large batches: lane-dense tiles (multiple of 128), sized so the grid has
    # at least 2 blocks -> dimension_semantics=("parallel",) can shard across
    # v7x's two TensorCores.  Capped at max_lane_tile (VMEM budget, see header).
    return min(_round_up(pl.cdiv(batch, 2), 128), max_lane_tile)


def ddpm_forward_feature_major(coef, z_fm, eta_fm, *, max_lane_tile=16384):
    """noisy_fm = coef[0][None,:] * z_fm + coef[1][None,:] * eta_fm  (all (D,B))."""
    D, B = z_fm.shape
    tile = _pick_lane_tile(B, max_lane_tile)
    grid = (pl.cdiv(B, tile),)

    data_spec = pl.BlockSpec((D, tile), lambda i: (0, i))
    coef_spec = pl.BlockSpec((2, tile), lambda i: (0, i))

    return pl.pallas_call(
        _ddpm_fma_kernel,
        out_shape=jax.ShapeDtypeStruct((D, B), jnp.float32),
        grid=grid,
        in_specs=[coef_spec, data_spec, data_spec],
        out_specs=data_spec,
        compiler_params=pltpu.CompilerParams(
            dimension_semantics=("parallel",)),
    )(coef, z_fm, eta_fm)


@functools.partial(jax.jit, static_argnames=("max_lane_tile",))
def ddpm_forward(z, t, eta, sqrt_alpha_bars, sqrt_one_minus_alpha_bars,
                 *, max_lane_tile=16384):
    """noisy = sqrt(alpha_bar[t]) * z + sqrt(1 - alpha_bar[t]) * eta  (batch-major I/O)."""
    B, D = z.shape
    N = sqrt_alpha_bars.shape[0]

    # Bounds-safe timestep indexing (table OOB is unchecked on TPU).
    t = jnp.clip(t.astype(jnp.int32), 0, N - 1)

    # Packed (2, B) lane-dense coefficient operand: a single small DMA.
    coef = jnp.stack([sqrt_alpha_bars[t],
                      sqrt_one_minus_alpha_bars[t]]).astype(jnp.float32)

    # Feature-major (D, B) so the batch rides the 128-wide lane axis.
    # TODO(synk): keep z/eta feature-major in a real pipeline (or fuse into the
    # ScoreModel kernel) so these layout-plumbing transposes disappear.
    z_fm = jnp.transpose(z.astype(jnp.float32))
    eta_fm = jnp.transpose(eta.astype(jnp.float32))

    out_fm = ddpm_forward_feature_major(coef, z_fm, eta_fm,
                                        max_lane_tile=max_lane_tile)
    return jnp.transpose(out_fm)


def get_linear_coefs(N=1000):
    # DDPM.get_coefs(N, "linear") + one-time precompute of the two sqrt tables
    # reused by every forward call (no transcendentals in the kernel hot path).
    betas = jnp.linspace(1e-4, 0.02, N).astype(jnp.float32)
    alphas = 1.0 - betas
    alpha_bars = jnp.cumprod(alphas).astype(jnp.float32)
    sqrt_alpha_bars = jnp.sqrt(alpha_bars)
    sqrt_one_minus_alpha_bars = jnp.sqrt(1.0 - alpha_bars)
    return betas, alphas, alpha_bars, sqrt_alpha_bars, sqrt_one_minus_alpha_bars


if __name__ == "__main__":
    D, N = 30, 1000
    _, _, alpha_bars, sqrt_ab, sqrt_1m_ab = get_linear_coefs(N)

    key = jax.random.PRNGKey(0)

    def run_and_check(B, key):
        kz, ke, kt = jax.random.split(key, 3)
        z = jax.random.normal(kz, (B, D), dtype=jnp.float32)
        eta = jax.random.normal(ke, (B, D), dtype=jnp.float32)  # eta passed explicitly
        t = jax.random.randint(kt, (B,), 0, N, dtype=jnp.int32)

        out = ddpm_forward(z, t, eta, sqrt_ab, sqrt_1m_ab)
        out = jax.block_until_ready(out)

        # Pure-JAX reference of the same PyTorch forward.
        a_bar = alpha_bars[t][:, None]
        ref = jnp.sqrt(a_bar) * z + jnp.sqrt(1.0 - a_bar) * eta
        assert out.shape == (B, D) and out.dtype == jnp.float32
        assert jnp.allclose(out, ref, atol=1e-6, rtol=1e-5)

    k1, k2 = jax.random.split(key)
    run_and_check(8, k1)      # single full-extent block path (module's tiny size)
    run_and_check(4096, k2)   # lane-dense tiled path: tile=2048, grid=(2,) ("parallel")

    print("KERNEL_OK")
</pallas_src>

<mosaic_0001>
module attributes {stable_mosaic.version = 11 : i64} {
  func.func @_ddpm_fma_kernel(%arg0: i32, %arg1: memref<2x8xf32, #tpu.memory_space<vmem>>, %arg2: memref<30x8xf32, #tpu.memory_space<vmem>>, %arg3: memref<30x8xf32, #tpu.memory_space<vmem>>, %arg4: memref<30x8xf32, #tpu.memory_space<vmem>>) attributes {dimension_semantics = [#tpu.dimension_semantics<parallel>], iteration_bounds = array<i64: 1>, scalar_prefetch = 0 : i64, scratch_operands = 0 : i64, tpu.core_type = #tpu.core_type<tc>, window_params = [{transform_indices = @transform_0, window_bounds = array<i64: 2, 8>}, {transform_indices = @transform_1, window_bounds = array<i64: 30, 8>}, {transform_indices = @transform_2, window_bounds = array<i64: 30, 8>}, {transform_indices = @transform_3, window_bounds = array<i64: 30, 8>}]} {
    %c0 = arith.constant 0 : index
    %c0_0 = arith.constant 0 : index
    %0 = vector.load %arg1[%c0, %c0_0] : memref<2x8xf32, #tpu.memory_space<vmem>>, vector<1x8xf32>
    %c1 = arith.constant 1 : index
    %c0_1 = arith.constant 0 : index
    %1 = vector.load %arg1[%c1, %c0_1] : memref<2x8xf32, #tpu.memory_space<vmem>>, vector<1x8xf32>
    %c0_2 = arith.constant 0 : index
    %c0_3 = arith.constant 0 : index
    %2 = vector.load %arg2[%c0_2, %c0_3] : memref<30x8xf32, #tpu.memory_space<vmem>>, vector<30x8xf32>
    %3 = vector.broadcast %0 : vector<1x8xf32> to vector<30x8xf32>
    %4 = arith.mulf %3, %2 : vector<30x8xf32>
    %c0_4 = arith.constant 0 : index
    %c0_5 = arith.constant 0 : index
    %5 = vector.load %arg3[%c0_4, %c0_5] : memref<30x8xf32, #tpu.memory_space<vmem>>, vector<30x8xf32>
    %6 = vector.broadcast %1 : vector<1x8xf32> to vector<30x8xf32>
    %7 = arith.mulf %6, %5 : vector<30x8xf32>
    %8 = arith.addf %4, %7 : vector<30x8xf32>
    %c0_6 = arith.constant 0 : index
    %c0_7 = arith.constant 0 : index
    %9 = vector.load %arg4[%c0_6, %c0_7] : memref<30x8xf32, #tpu.memory_space<vmem>>, vector<30x8xf32>
    tpu.vector_store %arg4[%c0_6, %c0_7], %8 {strides = array<i32>} : memref<30x8xf32, #tpu.memory_space<vmem>>, vector<30x8xf32>,
    return
  }
  func.func @transform_0(%arg0: i32) -> (i32, i32) {
    %c0_i32 = arith.constant 0 : i32
    %c0_i32_0 = arith.constant 0 : i32
    return %c0_i32, %arg0 : i32, i32
  }
  func.func @transform_1(%arg0: i32) -> (i32, i32) {
    %c0_i32 = arith.constant 0 : i32
    %c0_i32_0 = arith.constant 0 : i32
    return %c0_i32, %arg0 : i32, i32
  }
  func.func @transform_2(%arg0: i32) -> (i32, i32) {
    %c0_i32 = arith.constant 0 : i32
    %c0_i32_0 = arith.constant 0 : i32
    return %c0_i32, %arg0 : i32, i32
  }
  func.func @transform_3(%arg0: i32) -> (i32, i32) {
    %c0_i32 = arith.constant 0 : i32
    %c0_i32_0 = arith.constant 0 : i32
    return %c0_i32, %arg0 : i32, i32
  }
}

</mosaic_0001>

<llo_original>
// kernel: ddpm_forward.1
$region0: #{ddpm_forward.1}
  #allocation0 [shape = 'u32[]', space=smem, size = 0x4, offset = 0x4, fixed_abs, tag = 'smem constant byte address 0x4 - core index']
  #allocation1 [shape = 'u32[144,128]{1,0:T(1,128)}', space=vmem, size = 0x12000, scoped, tag = 'internal scratch']
  %s0 = inlined_call_operand.vmem [shape: f32[2,8], index: 0, kind: input, shape index: {}]
  %s1 = inlined_call_operand.vmem [shape: f32[30,8], index: 1, kind: input, shape index: {}]
  %s2 = inlined_call_operand.vmem [shape: f32[30,8], index: 2, kind: input, shape index: {}]
  %s3 = inlined_call_operand.vmem [shape: f32[30,8], index: 3, kind: output, shape index: {}]
  %s4 = sld [smem:[#allocation0]]
  $region22: #{ddpm_forward.1} parent=0
    _
  %s6 = ssub.s32 1, %s4
  %s7 = scalar_select 0, %s6, %s4
  // Predicated region
  $region2: #{ddpm_forward.1} parent=0 // pred_check
    _
  $region3: #{ddpm_forward.1} parent=0 // pred_check_branch
    %9 = sbr.rel (0) target = $region5
  $region4: #{ddpm_forward.1} parent=0 // pred_region
    _
  $region5: #{ddpm_forward.1} parent=0 // pred_fallthru
    _
  // Predicated region
  $region6: #{ddpm_forward.1} parent=0 // pred_check
    _
  $region7: #{ddpm_forward.1} parent=0 // pred_check_branch
    %11 = sbr.rel (0) target = $region9
  $region8: #{ddpm_forward.1} parent=0 // pred_region
    _
  $region9: #{ddpm_forward.1} parent=0 // pred_fallthru
    _
  // Predicated region
  $region10: #{ddpm_forward.1} parent=0 // pred_check
    _
  $region11: #{ddpm_forward.1} parent=0 // pred_check_branch
    %13 = sbr.rel (0) target = $region13
  $region12: #{ddpm_forward.1} parent=0 // pred_region
    _
  $region13: #{ddpm_forward.1} parent=0 // pred_fallthru
    _
  %v14 = vld [vmem:[%s0] sm:$0x1]
  %v15 = vld [vmem:[%s0 + $0x1] sm:$0x1]
  %v16 = vld [vmem:[%s1] sm:$0xff]
  %v17 = vld [vmem:[%s1 + $0x8] sm:$0xff]
  %v18 = vld [vmem:[%s1 + $0x10] sm:$0xff]
  %v19 = vld [vmem:[%s1 + $0x18] sm:$0x3f]
  %v20 = vlaneseq
  %v21 = vshrl.u32 %v20, 7
  %v22 = vsub.s32 0, %v21
  %v23 = vrot.slane %v14, %v22
  %v24 = vmul.f32 %v23, %v16
  %v25 = vmul.f32 %v23, %v17
  %v26 = vmul.f32 %v23, %v18
  %v27 = vmul.f32 %v23, %v19
  %v28 = vld [vmem:[%s2] sm:$0xff]
  %v29 = vld [vmem:[%s2 + $0x8] sm:$0xff]
  %v30 = vld [vmem:[%s2 + $0x10] sm:$0xff]
  %v31 = vld [vmem:[%s2 + $0x18] sm:$0x3f]
  %v32 = vlaneseq
  %v33 = vshrl.u32 %v32, 7
  %v34 = vsub.s32 0, %v33
  %v35 = vrot.slane %v15, %v34
  %v36 = vmul.f32 %v35, %v28
  %v37 = vmul.f32 %v35, %v29
  %v38 = vmul.f32 %v35, %v30
  %v39 = vmul.f32 %v35, %v31
  %v40 = vadd.f32 %v24, %v36
  %v41 = vadd.f32 %v25, %v37
  %v42 = vadd.f32 %v26, %v38
  %v43 = vadd.f32 %v27, %v39
  %vm44 = vcmask 64512
  %45 = vst.msk [vmem:[%s3] sm:$0xff] %vm44, %v40
  %46 = vst.msk [vmem:[%s3 + $0x8] sm:$0xff] %vm44, %v41
  %47 = vst.msk [vmem:[%s3 + $0x10] sm:$0xff] %vm44, %v42
  %vm48 = vcmask 62464
  %49 = vst.msk [vmem:[%s3 + $0x18] sm:$0x3f] %vm48, %v43
  // Predicated region
  $region14: #{ddpm_forward.1} parent=0 // pred_check
    _
  $region15: #{ddpm_forward.1} parent=0 // pred_check_branch
    %51 = sbr.rel (0) target = $region17
  $region16: #{ddpm_forward.1} parent=0 // pred_region
    _
  $region17: #{ddpm_forward.1} parent=0 // pred_fallthru
    _
  // Predicated region
  $region18: #{ddpm_forward.1} parent=0 // pred_check
    _
  $region19: #{ddpm_forward.1} parent=0 // pred_check_branch
    %53 = sbr.rel (0) target = $region21
  $region20: #{ddpm_forward.1} parent=0 // pred_region
    _
  $region21: #{ddpm_forward.1} parent=0 // pred_fallthru
    _

</llo_original>
